<compile_context>
chip_gen: v6e
topology: v6e:2x2x1
jax: 0.10.0
libtpu: 0.0.40
codegen_flags: <defaults>
</compile_context>

<pallas_src>
import numpy as np
import jax
import jax.numpy as jnp
from jax.experimental import pallas as pl
from jax.experimental.pallas import tpu as pltpu

# ----------------------------- constants -----------------------------------
SMPL_DOWN = [0, 1, 2, 4, 5, 7, 8, 10, 11]
SMPL_UP = [3, 6, 9, 12, 13, 14, 15, 16, 17, 18, 19, 20, 21, 22, 23]

JOINT_CHANNEL = 3          # hps.joint_channel
ROT_CHANNEL = 6            # hps.rot_channel (use_6d_rotation = True)
N_JOINTS = 24
N_UP = len(SMPL_UP)        # 15
N_DOWN = len(SMPL_DOWN)    # 9
HIDDEN = 32                # per-branch hidden width of the MLP stand-in

C_UP_POS = N_UP * JOINT_CHANNEL          # 45
C_DOWN_POS = N_DOWN * JOINT_CHANNEL      # 27
C_UP_ROT = N_UP * ROT_CHANNEL            # 90
C_DOWN_ROT = N_DOWN * ROT_CHANNEL        # 54
C_UP_IN = C_UP_POS + C_UP_ROT            # 135
C_DOWN_IN = C_DOWN_POS + C_DOWN_ROT + 3  # 84  (pos + rot6d + velocity)
C_DOWN_OUT = C_DOWN_ROT + 3              # 57  (rot6d reconstruction + velocity)

# Fused, lane-padded layout (joint-major d6, then vel, then joint positions):
D6_WIDTH = N_JOINTS * ROT_CHANNEL        # 144
VEL_OFF = D6_WIDTH                       # 144
POS_OFF = VEL_OFF + 3                    # 147
RAW_WIDTH = POS_OFF + N_JOINTS * JOINT_CHANNEL  # 219
C_PAD = 256                              # 2 * 128 lanes
H_PAD = 128                              # padded fused hidden width


def _round_up(x, m):
    return (x + m - 1) // m * m


# --------------------------- Pallas kernel A --------------------------------
# Fused "vqvae_up"+"vqvae_down" stand-in: one block-diagonal 2-layer MLP on a
# lane-padded (bm, 256) slab, plus masked per-block L1 partial sums.
def _run_fused_mlp(xin, up_mask, dn_mask, w1, b1, w2, b2, m_actual, bm):
    mp, cpad = xin.shape
    hpad = w1.shape[1]
    grid_m = mp // bm

    def kernel(xin_ref, upm_ref, dnm_ref, w1_ref, b1_ref, w2_ref, b2_ref,
               out_ref, lu_ref, ld_ref):
        xin_blk = xin_ref[...]                                   # (bm, 256)
        h = jnp.maximum(
            jnp.dot(xin_blk, w1_ref[...],
                    preferred_element_type=jnp.float32) + b1_ref[...], 0.0)
        out = (jnp.dot(h, w2_ref[...],
                       preferred_element_type=jnp.float32) + b2_ref[...])
        out_ref[...] = out                                       # (bm, 256)

        # L1 partial sums for this block (row-masked against padded rows).
        row = (pl.program_id(0) * bm
               + jax.lax.broadcasted_iota(jnp.int32, (bm, 1), 0))
        rmask = (row < m_actual).astype(jnp.float32)             # (bm, 1)
        d = jnp.abs(out - xin_blk) * rmask                       # target == xin cols
        lu = jnp.sum(d * upm_ref[...])
        ld = jnp.sum(d * dnm_ref[...])
        ones = jnp.ones((1, 8, 128), jnp.float32)
        lu_ref[...] = lu * ones
        ld_ref[...] = ld * ones

    row_spec = pl.BlockSpec((bm, cpad), lambda i: (i, 0))
    const2 = lambda i: (0, 0)
    loss_spec = pl.BlockSpec((1, 8, 128), lambda i: (i, 0, 0))

    out, lu, ld = pl.pallas_call(
        kernel,
        grid=(grid_m,),
        in_specs=[
            row_spec,
            pl.BlockSpec((1, cpad), const2),          # up loss mask
            pl.BlockSpec((1, cpad), const2),          # down loss mask
            pl.BlockSpec((cpad, hpad), const2),       # W1
            pl.BlockSpec((1, hpad), const2),          # b1
            pl.BlockSpec((hpad, cpad), const2),       # W2
            pl.BlockSpec((1, cpad), const2),          # b2
        ],
        out_specs=[row_spec, loss_spec, loss_spec],
        out_shape=[
            jax.ShapeDtypeStruct((mp, cpad), jnp.float32),
            jax.ShapeDtypeStruct((grid_m, 8, 128), jnp.float32),
            jax.ShapeDtypeStruct((grid_m, 8, 128), jnp.float32),
        ],
        compiler_params=pltpu.CompilerParams(
            dimension_semantics=("parallel",)),
    )(xin, up_mask, dn_mask, w1, b1, w2, b2)

    return out, jnp.sum(lu[:, 0, 0]), jnp.sum(ld[:, 0, 0])


# --------------------------- Pallas kernel B --------------------------------
# rotation_6d_to_matrix (Gram-Schmidt + cross product) on a lane-dense
# component-major layout: d6 (6, R, 128), mat (9, R, 128).
def _rot6d_to_matrix_kernel(d6_ref, mat_ref):
    eps2 = 1e-24
    a1x, a1y, a1z = d6_ref[0], d6_ref[1], d6_ref[2]
    a2x, a2y, a2z = d6_ref[3], d6_ref[4], d6_ref[5]

    # b1 = normalize(a1)   (F.normalize: v / max(||v||, eps))
    inv1 = jax.lax.rsqrt(jnp.maximum(a1x * a1x + a1y * a1y + a1z * a1z, eps2))
    b1x, b1y, b1z = a1x * inv1, a1y * inv1, a1z * inv1

    # b2 = normalize(a2 - <b1, a2> b1)
    d = b1x * a2x + b1y * a2y + b1z * a2z
    u2x, u2y, u2z = a2x - d * b1x, a2y - d * b1y, a2z - d * b1z
    inv2 = jax.lax.rsqrt(jnp.maximum(u2x * u2x + u2y * u2y + u2z * u2z, eps2))
    b2x, b2y, b2z = u2x * inv2, u2y * inv2, u2z * inv2

    # b3 = b1 x b2
    b3x = b1y * b2z - b1z * b2y
    b3y = b1z * b2x - b1x * b2z
    b3z = b1x * b2y - b1y * b2x

    mat_ref[0] = b1x
    mat_ref[1] = b1y
    mat_ref[2] = b1z
    mat_ref[3] = b2x
    mat_ref[4] = b2y
    mat_ref[5] = b2z
    mat_ref[6] = b3x
    mat_ref[7] = b3y
    mat_ref[8] = b3z


def _run_rot6d_to_matrix(d6_cm3, br):
    _, rp, _ = d6_cm3.shape
    grid = (rp // br,)
    return pl.pallas_call(
        _rot6d_to_matrix_kernel,
        grid=grid,
        in_specs=[pl.BlockSpec((6, br, 128), lambda i: (0, i, 0))],
        out_specs=pl.BlockSpec((9, br, 128), lambda i: (0, i, 0)),
        out_shape=jax.ShapeDtypeStruct((9, rp, 128), jnp.float32),
        compiler_params=pltpu.CompilerParams(
            dimension_semantics=("parallel",)),
    )(d6_cm3)


# ------------------------------ parameters ----------------------------------
def _pack_fused_weights(w1u, b1u, w2u, b2u, w1d, b1d, w2d, b2d, hidden):
    """Fold the SMPL up/down joint permutations, the root-position zeroing and
    the up/down output scatter into one padded block-diagonal weight pair."""
    w1u = np.asarray(w1u); b1u = np.asarray(b1u)
    w2u = np.asarray(w2u); b2u = np.asarray(b2u)
    w1d = np.asarray(w1d); b1d = np.asarray(b1d)
    w2d = np.asarray(w2d); b2d = np.asarray(b2d)

    W1 = np.zeros((C_PAD, H_PAD), np.float32)
    B1 = np.zeros((1, H_PAD), np.float32)
    W2 = np.zeros((H_PAD, C_PAD), np.float32)
    B2 = np.zeros((1, C_PAD), np.float32)

    # ---- up branch -> fused hidden columns [0:hidden) ----
    for uj, j in enumerate(SMPL_UP):
        # joint positions (w1u rows 0:45)
        W1[POS_OFF + 3 * j: POS_OFF + 3 * j + 3, 0:hidden] = w1u[3 * uj: 3 * uj + 3]
        # joint rot6d (w1u rows 45:135)
        W1[6 * j: 6 * j + 6, 0:hidden] = w1u[C_UP_POS + 6 * uj: C_UP_POS + 6 * uj + 6]
        # output rot6d scatter (w2u cols uj*6 -> joint-major cols j*6)
        W2[0:hidden, 6 * j: 6 * j + 6] = w2u[:, 6 * uj: 6 * uj + 6]
        B2[0, 6 * j: 6 * j + 6] = b2u[0, 6 * uj: 6 * uj + 6]
    B1[0, 0:hidden] = b1u[0]

    # ---- down branch -> fused hidden columns [hidden:2*hidden) ----
    for dj, j in enumerate(SMPL_DOWN):
        if j != 0:  # x[:, :, :3] = 0 (root position) folded in as zero rows
            W1[POS_OFF + 3 * j: POS_OFF + 3 * j + 3, hidden:2 * hidden] = \
                w1d[3 * dj: 3 * dj + 3]
        W1[6 * j: 6 * j + 6, hidden:2 * hidden] = \
            w1d[C_DOWN_POS + 6 * dj: C_DOWN_POS + 6 * dj + 6]
        W2[hidden:2 * hidden, 6 * j: 6 * j + 6] = w2d[:, 6 * dj: 6 * dj + 6]
        B2[0, 6 * j: 6 * j + 6] = b2d[0, 6 * dj: 6 * dj + 6]
    # velocity input rows / output cols (down branch only)
    W1[VEL_OFF:VEL_OFF + 3, hidden:2 * hidden] = w1d[C_DOWN_POS + C_DOWN_ROT:]
    W2[hidden:2 * hidden, VEL_OFF:VEL_OFF + 3] = w2d[:, C_DOWN_ROT:]
    B2[0, VEL_OFF:VEL_OFF + 3] = b2d[0, C_DOWN_ROT:]
    B1[0, hidden:2 * hidden] = b1d[0]

    return (jnp.asarray(W1), jnp.asarray(B1), jnp.asarray(W2), jnp.asarray(B2))


def _make_loss_masks():
    up = np.zeros((1, C_PAD), np.float32)
    dn = np.zeros((1, C_PAD), np.float32)
    for j in SMPL_UP:
        up[0, 6 * j: 6 * j + 6] = 1.0
    for j in SMPL_DOWN:
        dn[0, 6 * j: 6 * j + 6] = 1.0
    dn[0, VEL_OFF:VEL_OFF + 3] = 1.0
    return jnp.asarray(up), jnp.asarray(dn)


def init_params(hidden=HIDDEN, seed=1):
    k = jax.random.PRNGKey(seed)
    k1, k2, k3, k4 = jax.random.split(k, 4)
    s = 0.05
    w1u = s * jax.random.normal(k1, (C_UP_IN, hidden), jnp.float32)
    b1u = jnp.zeros((1, hidden), jnp.float32)
    w2u = s * jax.random.normal(k2, (hidden, C_UP_ROT), jnp.float32)
    b2u = jnp.zeros((1, C_UP_ROT), jnp.float32)
    w1d = s * jax.random.normal(k3, (C_DOWN_IN, hidden), jnp.float32)
    b1d = jnp.zeros((1, hidden), jnp.float32)
    w2d = s * jax.random.normal(k4, (hidden, C_DOWN_OUT), jnp.float32)
    b2d = jnp.zeros((1, C_DOWN_OUT), jnp.float32)

    W1, B1, W2, B2 = _pack_fused_weights(w1u, b1u, w2u, b2u,
                                         w1d, b1d, w2d, b2d, hidden)
    up_mask, dn_mask = _make_loss_masks()
    return {"W1": W1, "b1": B1, "W2": W2, "b2": B2,
            "up_mask": up_mask, "dn_mask": dn_mask}


# ------------------------------ forward glue ---------------------------------
def sep_vqvae_rmix_forward(x, x_rot, params, block_m=1024):
    """SepVQVAERmix.forward.

    x     : (b, t, 72)  joint positions (24 joints * 3)
    x_rot : (b, t, 219) = [vel(3) | 24 row-major 3x3 rotation matrices (216)]
    returns (xout_mat (b,t,219), loss scalar, [metrics_up, metrics_down])
    """
    b, t, _ = x.shape
    M = b * t

    vel = x_rot[:, :, :3].reshape(M, 3)
    rot = x_rot[:, :, 3:].reshape(M, N_JOINTS, 3, 3)
    # matrix_to_rotation_6d: first two rows of each 3x3 matrix (joint-major)
    d6 = rot[:, :, :2, :].reshape(M, D6_WIDTH)                   # (M, 144)
    pos = x.reshape(M, N_JOINTS * JOINT_CHANNEL)                 # (M, 72)
    # NOTE: x[:, :, :3] = 0 and the SMPL up/down joint gathers are folded into W1.
    xin = jnp.concatenate(
        [d6, vel, pos, jnp.zeros((M, C_PAD - RAW_WIDTH), jnp.float32)], axis=-1)

    # row padding / tile size
    mp = _round_up(max(M, 8), 8)
    bm = mp if mp <= block_m else block_m
    mp = _round_up(mp, bm)
    if mp > M:
        xin = jnp.pad(xin, ((0, mp - M), (0, 0)))

    # --- kernel A: fused sub-VQVAE forwards (MLP stand-ins) + L1 partials ---
    out, lu_sum, ld_sum = _run_fused_mlp(
        xin, params["up_mask"], params["dn_mask"],
        params["W1"], params["b1"], params["W2"], params["b2"], M, bm)
    loss_up = lu_sum / (M * C_UP_ROT)
    loss_down = ld_sum / (M * C_DOWN_OUT)
    loss = (loss_up + loss_down) * 0.5

    x_out_vel = out[:M, VEL_OFF:VEL_OFF + 3]                     # (M, 3)
    d6_rec = out[:M, :D6_WIDTH]                                  # (M, 144)

    # --- kernel B: rotation_6d_to_matrix on lane-dense component-major data ---
    L = M * N_JOINTS
    d6_cm = jnp.transpose(d6_rec.reshape(M, N_JOINTS, ROT_CHANNEL),
                          (2, 0, 1)).reshape(ROT_CHANNEL, L)     # (6, M*24)
    lp = _round_up(L, 128)
    if lp > L:
        d6_cm = jnp.pad(d6_cm, ((0, 0), (0, lp - L)))
    R = lp // 128
    br = R if R <= 256 else 256
    rp = _round_up(R, br)
    d6_cm3 = d6_cm.reshape(ROT_CHANNEL, R, 128)
    if rp > R:
        d6_cm3 = jnp.pad(d6_cm3, ((0, 0), (0, rp - R), (0, 0)))

    mat_cm3 = _run_rot6d_to_matrix(d6_cm3, br)                   # (9, rp, 128)
    mats = (mat_cm3.reshape(9, rp * 128)[:, :L]
            .reshape(9, M, N_JOINTS)
            .transpose(1, 2, 0)
            .reshape(M, N_JOINTS * 9))                           # (M, 216)

    xout_mat = jnp.concatenate([x_out_vel, mats], axis=-1).reshape(b, t, -1)

    # TODO(synk): metrics dicts come from the (unavailable) sub-VQVAEs.
    metrics_up, metrics_down = {}, {}
    return xout_mat, loss, [metrics_up, metrics_down]


# --------------------------------- main --------------------------------------
if __name__ == "__main__":
    b, t = 2, 16
    key = jax.random.PRNGKey(0)
    kx, kr = jax.random.split(key)
    x = jax.random.normal(kx, (b, t, N_JOINTS * JOINT_CHANNEL),
                          dtype=jnp.float32)
    x_rot = jax.random.normal(kr, (b, t, 3 + N_JOINTS * 9), dtype=jnp.float32)

    params = init_params(HIDDEN)

    fwd = jax.jit(lambda xx, xr, pp: sep_vqvae_rmix_forward(xx, xr, pp))
    xout_mat, loss, metrics = fwd(x, x_rot, params)
    jax.block_until_ready((xout_mat, loss))

    assert xout_mat.shape == (b, t, 3 + N_JOINTS * 9)
    assert xout_mat.dtype == jnp.float32
    assert loss.shape == ()
    assert bool(jnp.isfinite(loss))
    print("KERNEL_OK")
</pallas_src>

<mosaic_0001>
module attributes {stable_mosaic.version = 11 : i64} {
  func.func @kernel(%arg0: i32, %arg1: memref<32x256xf32, #tpu.memory_space<vmem>>, %arg2: memref<1x256xf32, #tpu.memory_space<vmem>>, %arg3: memref<1x256xf32, #tpu.memory_space<vmem>>, %arg4: memref<256x128xf32, #tpu.memory_space<vmem>>, %arg5: memref<1x128xf32, #tpu.memory_space<vmem>>, %arg6: memref<128x256xf32, #tpu.memory_space<vmem>>, %arg7: memref<1x256xf32, #tpu.memory_space<vmem>>, %arg8: memref<32x256xf32, #tpu.memory_space<vmem>>, %arg9: memref<1x8x128xf32, #tpu.memory_space<vmem>>, %arg10: memref<1x8x128xf32, #tpu.memory_space<vmem>>) attributes {dimension_semantics = [#tpu.dimension_semantics<parallel>], iteration_bounds = array<i64: 1>, scalar_prefetch = 0 : i64, scratch_operands = 0 : i64, tpu.core_type = #tpu.core_type<tc>, window_params = [{transform_indices = @transform_0, window_bounds = array<i64: 32, 256>}, {pipeline_mode = #tpu.pipeline_mode<synchronous>, transform_indices = @transform_1, window_bounds = array<i64: 1, 256>}, {pipeline_mode = #tpu.pipeline_mode<synchronous>, transform_indices = @transform_2, window_bounds = array<i64: 1, 256>}, {pipeline_mode = #tpu.pipeline_mode<synchronous>, transform_indices = @transform_3, window_bounds = array<i64: 256, 128>}, {pipeline_mode = #tpu.pipeline_mode<synchronous>, transform_indices = @transform_4, window_bounds = array<i64: 1, 128>}, {pipeline_mode = #tpu.pipeline_mode<synchronous>, transform_indices = @transform_5, window_bounds = array<i64: 128, 256>}, {pipeline_mode = #tpu.pipeline_mode<synchronous>, transform_indices = @transform_6, window_bounds = array<i64: 1, 256>}, {transform_indices = @transform_7, window_bounds = array<i64: 32, 256>}, {transform_indices = @transform_8, window_bounds = array<i64: 1, 8, 128>}, {transform_indices = @transform_9, window_bounds = array<i64: 1, 8, 128>}]} {
    %c0 = arith.constant 0 : index
    %c0_0 = arith.constant 0 : index
    %0 = vector.load %arg1[%c0, %c0_0] : memref<32x256xf32, #tpu.memory_space<vmem>>, vector<32x256xf32>
    %c0_1 = arith.constant 0 : index
    %c0_2 = arith.constant 0 : index
    %1 = vector.load %arg4[%c0_1, %c0_2] : memref<256x128xf32, #tpu.memory_space<vmem>>, vector<256x128xf32>
    %cst = arith.constant dense<0.000000e+00> : vector<32x128xf32>
    %2 = tpu.matmul %0, %1, %cst {dimension_numbers = #tpu.dot_dimension_numbers<[1], [0], [0], [1], [0, 0, 1, 1], [], []>} : vector<32x256xf32>, vector<256x128xf32>, vector<32x128xf32> -> vector<32x128xf32>
    %c0_3 = arith.constant 0 : index
    %c0_4 = arith.constant 0 : index
    %3 = vector.load %arg5[%c0_3, %c0_4] : memref<1x128xf32, #tpu.memory_space<vmem>>, vector<1x128xf32>
    %4 = vector.broadcast %3 : vector<1x128xf32> to vector<32x128xf32>
    %5 = arith.addf %2, %4 : vector<32x128xf32>
    %cst_5 = arith.constant 0.000000e+00 : f32
    %6 = vector.broadcast %cst_5 : f32 to vector<32x128xf32>
    %7 = arith.maximumf %5, %6 : vector<32x128xf32>
    %c0_6 = arith.constant 0 : index
    %c0_7 = arith.constant 0 : index
    %8 = vector.load %arg6[%c0_6, %c0_7] : memref<128x256xf32, #tpu.memory_space<vmem>>, vector<128x256xf32>
    %cst_8 = arith.constant dense<0.000000e+00> : vector<32x256xf32>
    %9 = tpu.matmul %7, %8, %cst_8 {dimension_numbers = #tpu.dot_dimension_numbers<[1], [0], [0], [1], [0, 0, 1, 1], [], []>} : vector<32x128xf32>, vector<128x256xf32>, vector<32x256xf32> -> vector<32x256xf32>
    %c0_9 = arith.constant 0 : index
    %c0_10 = arith.constant 0 : index
    %10 = vector.load %arg7[%c0_9, %c0_10] : memref<1x256xf32, #tpu.memory_space<vmem>>, vector<1x256xf32>
    %11 = vector.broadcast %10 : vector<1x256xf32> to vector<32x256xf32>
    %12 = arith.addf %9, %11 : vector<32x256xf32>
    %c0_11 = arith.constant 0 : index
    %c0_12 = arith.constant 0 : index
    %13 = vector.load %arg8[%c0_11, %c0_12] : memref<32x256xf32, #tpu.memory_space<vmem>>, vector<32x256xf32>
    tpu.vector_store %arg8[%c0_11, %c0_12], %12 {strides = array<i32>} : memref<32x256xf32, #tpu.memory_space<vmem>>, vector<32x256xf32>,
    %c32_i32 = arith.constant 32 : i32
    %14 = arith.muli %arg0, %c32_i32 : i32
    %15 = tpu.iota {dimensions = array<i32: 0>} : vector<32x1xi32>
    %16 = vector.broadcast %14 : i32 to vector<32x1xi32>
    %17 = arith.addi %16, %15 : vector<32x1xi32>
    %c32_i32_13 = arith.constant 32 : i32
    %18 = vector.broadcast %c32_i32_13 : i32 to vector<32x1xi32>
    %19 = arith.cmpi slt, %17, %18 : vector<32x1xi32>
    %20 = arith.extui %19 : vector<32x1xi1> to vector<32x1xi32>
    %21 = arith.sitofp %20 : vector<32x1xi32> to vector<32x1xf32>
    %22 = arith.subf %12, %0 : vector<32x256xf32>
    %23 = math.absf %22 : vector<32x256xf32>
    %24 = vector.broadcast %21 : vector<32x1xf32> to vector<32x256xf32>
    %25 = arith.mulf %23, %24 : vector<32x256xf32>
    %c0_14 = arith.constant 0 : index
    %c0_15 = arith.constant 0 : index
    %26 = vector.load %arg2[%c0_14, %c0_15] : memref<1x256xf32, #tpu.memory_space<vmem>>, vector<1x256xf32>
    %27 = vector.broadcast %26 : vector<1x256xf32> to vector<32x256xf32>
    %28 = arith.mulf %25, %27 : vector<32x256xf32>
    %29 = vector.shape_cast %28 : vector<32x256xf32> to vector<1x32x256xf32>
    %cst_16 = arith.constant dense<0.000000e+00> : vector<1xf32>
    %30 = vector.multi_reduction <add>, %29, %cst_16 [1, 2] : vector<1x32x256xf32> to vector<1xf32>
    %31 = vector.shape_cast %30 : vector<1xf32> to vector<1x1x1xf32>
    %32 = vector.extract %31[0, 0, 0] : f32 from vector<1x1x1xf32>
    %c0_17 = arith.constant 0 : index
    %c0_18 = arith.constant 0 : index
    %33 = vector.load %arg3[%c0_17, %c0_18] : memref<1x256xf32, #tpu.memory_space<vmem>>, vector<1x256xf32>
    %34 = vector.broadcast %33 : vector<1x256xf32> to vector<32x256xf32>
    %35 = arith.mulf %25, %34 : vector<32x256xf32>
    %36 = vector.shape_cast %35 : vector<32x256xf32> to vector<1x32x256xf32>
    %cst_19 = arith.constant dense<0.000000e+00> : vector<1xf32>
    %37 = vector.multi_reduction <add>, %36, %cst_19 [1, 2] : vector<1x32x256xf32> to vector<1xf32>
    %38 = vector.shape_cast %37 : vector<1xf32> to vector<1x1x1xf32>
    %39 = vector.extract %38[0, 0, 0] : f32 from vector<1x1x1xf32>
    %cst_20 = arith.constant 1.000000e+00 : f32
    %40 = vector.broadcast %cst_20 : f32 to vector<1x8x128xf32>
    %41 = vector.broadcast %32 : f32 to vector<1x8x128xf32>
    %42 = arith.mulf %41, %40 : vector<1x8x128xf32>
    %c0_21 = arith.constant 0 : index
    %c0_22 = arith.constant 0 : index
    %c0_23 = arith.constant 0 : index
    %43 = vector.load %arg9[%c0_21, %c0_22, %c0_23] : memref<1x8x128xf32, #tpu.memory_space<vmem>>, vector<1x8x128xf32>
    tpu.vector_store %arg9[%c0_21, %c0_22, %c0_23], %42 {strides = array<i32>} : memref<1x8x128xf32, #tpu.memory_space<vmem>>, vector<1x8x128xf32>,
    %44 = vector.broadcast %39 : f32 to vector<1x8x128xf32>
    %45 = arith.mulf %44, %40 : vector<1x8x128xf32>
    %c0_24 = arith.constant 0 : index
    %c0_25 = arith.constant 0 : index
    %c0_26 = arith.constant 0 : index
    %46 = vector.load %arg10[%c0_24, %c0_25, %c0_26] : memref<1x8x128xf32, #tpu.memory_space<vmem>>, vector<1x8x128xf32>
    tpu.vector_store %arg10[%c0_24, %c0_25, %c0_26], %45 {strides = array<i32>} : memref<1x8x128xf32, #tpu.memory_space<vmem>>, vector<1x8x128xf32>,
    return
  }
  func.func @transform_0(%arg0: i32) -> (i32, i32) {
    %c0_i32 = arith.constant 0 : i32
    %c0_i32_0 = arith.constant 0 : i32
    return %arg0, %c0_i32 : i32, i32
  }
  func.func @transform_1(%arg0: i32) -> (i32, i32) {
    %c0_i32 = arith.constant 0 : i32
    %c0_i32_0 = arith.constant 0 : i32
    %c0_i32_1 = arith.constant 0 : i32
    return %c0_i32, %c0_i32_0 : i32, i32
  }
  func.func @transform_2(%arg0: i32) -> (i32, i32) {
    %c0_i32 = arith.constant 0 : i32
    %c0_i32_0 = arith.constant 0 : i32
    %c0_i32_1 = arith.constant 0 : i32
    return %c0_i32, %c0_i32_0 : i32, i32
  }
  func.func @transform_3(%arg0: i32) -> (i32, i32) {
    %c0_i32 = arith.constant 0 : i32
    %c0_i32_0 = arith.constant 0 : i32
    %c0_i32_1 = arith.constant 0 : i32
    return %c0_i32, %c0_i32_0 : i32, i32
  }
  func.func @transform_4(%arg0: i32) -> (i32, i32) {
    %c0_i32 = arith.constant 0 : i32
    %c0_i32_0 = arith.constant 0 : i32
    %c0_i32_1 = arith.constant 0 : i32
    return %c0_i32, %c0_i32_0 : i32, i32
  }
  func.func @transform_5(%arg0: i32) -> (i32, i32) {
    %c0_i32 = arith.constant 0 : i32
    %c0_i32_0 = arith.constant 0 : i32
    %c0_i32_1 = arith.constant 0 : i32
    return %c0_i32, %c0_i32_0 : i32, i32
  }
  func.func @transform_6(%arg0: i32) -> (i32, i32) {
    %c0_i32 = arith.constant 0 : i32
    %c0_i32_0 = arith.constant 0 : i32
    %c0_i32_1 = arith.constant 0 : i32
    return %c0_i32, %c0_i32_0 : i32, i32
  }
  func.func @transform_7(%arg0: i32) -> (i32, i32) {
    %c0_i32 = arith.constant 0 : i32
    %c0_i32_0 = arith.constant 0 : i32
    return %arg0, %c0_i32 : i32, i32
  }
  func.func @transform_8(%arg0: i32) -> (i32, i32, i32) {
    %c0_i32 = arith.constant 0 : i32
    %c0_i32_0 = arith.constant 0 : i32
    %c0_i32_1 = arith.constant 0 : i32
    return %arg0, %c0_i32, %c0_i32_0 : i32, i32, i32
  }
  func.func @transform_9(%arg0: i32) -> (i32, i32, i32) {
    %c0_i32 = arith.constant 0 : i32
    %c0_i32_0 = arith.constant 0 : i32
    %c0_i32_1 = arith.constant 0 : i32
    return %arg0, %c0_i32, %c0_i32_0 : i32, i32, i32
  }
}

module attributes {stable_mosaic.version = 11 : i64} {
  func.func @_rot6d_to_matrix_kernel(%arg0: i32, %arg1: memref<6x6x128xf32, #tpu.memory_space<vmem>>, %arg2: memref<9x6x128xf32, #tpu.memory_space<vmem>>) attributes {dimension_semantics = [#tpu.dimension_semantics<parallel>], iteration_bounds = array<i64: 1>, scalar_prefetch = 0 : i64, scratch_operands = 0 : i64, tpu.core_type = #tpu.core_type<tc>, window_params = [{transform_indices = @transform_0, window_bounds = array<i64: 6, 6, 128>}, {transform_indices = @transform_1, window_bounds = array<i64: 9, 6, 128>}]} {
    %c0 = arith.constant 0 : index
    %c0_0 = arith.constant 0 : index
    %c0_1 = arith.constant 0 : index
    %0 = vector.load %arg1[%c0, %c0_0, %c0_1] : memref<6x6x128xf32, #tpu.memory_space<vmem>>, vector<1x6x128xf32>
    %1 = vector.shape_cast %0 : vector<1x6x128xf32> to vector<6x128xf32>
    %c1 = arith.constant 1 : index
    %c0_2 = arith.constant 0 : index
    %c0_3 = arith.constant 0 : index
    %2 = vector.load %arg1[%c1, %c0_2, %c0_3] : memref<6x6x128xf32, #tpu.memory_space<vmem>>, vector<1x6x128xf32>
    %3 = vector.shape_cast %2 : vector<1x6x128xf32> to vector<6x128xf32>
    %c2 = arith.constant 2 : index
    %c0_4 = arith.constant 0 : index
    %c0_5 = arith.constant 0 : index
    %4 = vector.load %arg1[%c2, %c0_4, %c0_5] : memref<6x6x128xf32, #tpu.memory_space<vmem>>, vector<1x6x128xf32>
    %5 = vector.shape_cast %4 : vector<1x6x128xf32> to vector<6x128xf32>
    %c3 = arith.constant 3 : index
    %c0_6 = arith.constant 0 : index
    %c0_7 = arith.constant 0 : index
    %6 = vector.load %arg1[%c3, %c0_6, %c0_7] : memref<6x6x128xf32, #tpu.memory_space<vmem>>, vector<1x6x128xf32>
    %7 = vector.shape_cast %6 : vector<1x6x128xf32> to vector<6x128xf32>
    %c4 = arith.constant 4 : index
    %c0_8 = arith.constant 0 : index
    %c0_9 = arith.constant 0 : index
    %8 = vector.load %arg1[%c4, %c0_8, %c0_9] : memref<6x6x128xf32, #tpu.memory_space<vmem>>, vector<1x6x128xf32>
    %9 = vector.shape_cast %8 : vector<1x6x128xf32> to vector<6x128xf32>
    %c5 = arith.constant 5 : index
    %c0_10 = arith.constant 0 : index
    %c0_11 = arith.constant 0 : index
    %10 = vector.load %arg1[%c5, %c0_10, %c0_11] : memref<6x6x128xf32, #tpu.memory_space<vmem>>, vector<1x6x128xf32>
    %11 = vector.shape_cast %10 : vector<1x6x128xf32> to vector<6x128xf32>
    %12 = arith.mulf %1, %1 : vector<6x128xf32>
    %13 = arith.mulf %3, %3 : vector<6x128xf32>
    %14 = arith.addf %12, %13 : vector<6x128xf32>
    %15 = arith.mulf %5, %5 : vector<6x128xf32>
    %16 = arith.addf %14, %15 : vector<6x128xf32>
    %cst = arith.constant 1.000000e-24 : f32
    %17 = vector.broadcast %cst : f32 to vector<6x128xf32>
    %18 = arith.maximumf %16, %17 : vector<6x128xf32>
    %19 = math.rsqrt %18 : vector<6x128xf32>
    %20 = arith.mulf %1, %19 : vector<6x128xf32>
    %21 = arith.mulf %3, %19 : vector<6x128xf32>
    %22 = arith.mulf %5, %19 : vector<6x128xf32>
    %23 = arith.mulf %20, %7 : vector<6x128xf32>
    %24 = arith.mulf %21, %9 : vector<6x128xf32>
    %25 = arith.addf %23, %24 : vector<6x128xf32>
    %26 = arith.mulf %22, %11 : vector<6x128xf32>
    %27 = arith.addf %25, %26 : vector<6x128xf32>
    %28 = arith.mulf %27, %20 : vector<6x128xf32>
    %29 = arith.subf %7, %28 : vector<6x128xf32>
    %30 = arith.mulf %27, %21 : vector<6x128xf32>
    %31 = arith.subf %9, %30 : vector<6x128xf32>
    %32 = arith.mulf %27, %22 : vector<6x128xf32>
    %33 = arith.subf %11, %32 : vector<6x128xf32>
    %34 = arith.mulf %29, %29 : vector<6x128xf32>
    %35 = arith.mulf %31, %31 : vector<6x128xf32>
    %36 = arith.addf %34, %35 : vector<6x128xf32>
    %37 = arith.mulf %33, %33 : vector<6x128xf32>
    %38 = arith.addf %36, %37 : vector<6x128xf32>
    %cst_12 = arith.constant 1.000000e-24 : f32
    %39 = vector.broadcast %cst_12 : f32 to vector<6x128xf32>
    %40 = arith.maximumf %38, %39 : vector<6x128xf32>
    %41 = math.rsqrt %40 : vector<6x128xf32>
    %42 = arith.mulf %29, %41 : vector<6x128xf32>
    %43 = arith.mulf %31, %41 : vector<6x128xf32>
    %44 = arith.mulf %33, %41 : vector<6x128xf32>
    %45 = arith.mulf %21, %44 : vector<6x128xf32>
    %46 = arith.mulf %22, %43 : vector<6x128xf32>
    %47 = arith.subf %45, %46 : vector<6x128xf32>
    %48 = arith.mulf %22, %42 : vector<6x128xf32>
    %49 = arith.mulf %20, %44 : vector<6x128xf32>
    %50 = arith.subf %48, %49 : vector<6x128xf32>
    %51 = arith.mulf %20, %43 : vector<6x128xf32>
    %52 = arith.mulf %21, %42 : vector<6x128xf32>
    %53 = arith.subf %51, %52 : vector<6x128xf32>
    %c0_13 = arith.constant 0 : index
    %c0_14 = arith.constant 0 : index
    %c0_15 = arith.constant 0 : index
    %54 = vector.load %arg2[%c0_13, %c0_14, %c0_15] : memref<9x6x128xf32, #tpu.memory_space<vmem>>, vector<1x6x128xf32>
    %55 = vector.shape_cast %54 : vector<1x6x128xf32> to vector<6x128xf32>
    %56 = vector.shape_cast %20 : vector<6x128xf32> to vector<1x6x128xf32>
    tpu.vector_store %arg2[%c0_13, %c0_14, %c0_15], %56 {strides = array<i32>} : memref<9x6x128xf32, #tpu.memory_space<vmem>>, vector<1x6x128xf32>,
    %c1_16 = arith.constant 1 : index
    %c0_17 = arith.constant 0 : index
    %c0_18 = arith.constant 0 : index
    %57 = vector.load %arg2[%c1_16, %c0_17, %c0_18] : memref<9x6x128xf32, #tpu.memory_space<vmem>>, vector<1x6x128xf32>
    %58 = vector.shape_cast %57 : vector<1x6x128xf32> to vector<6x128xf32>
    %59 = vector.shape_cast %21 : vector<6x128xf32> to vector<1x6x128xf32>
    tpu.vector_store %arg2[%c1_16, %c0_17, %c0_18], %59 {strides = array<i32>} : memref<9x6x128xf32, #tpu.memory_space<vmem>>, vector<1x6x128xf32>,
    %c2_19 = arith.constant 2 : index
    %c0_20 = arith.constant 0 : index
    %c0_21 = arith.constant 0 : index
    %60 = vector.load %arg2[%c2_19, %c0_20, %c0_21] : memref<9x6x128xf32, #tpu.memory_space<vmem>>, vector<1x6x128xf32>
    %61 = vector.shape_cast %60 : vector<1x6x128xf32> to vector<6x128xf32>
    %62 = vector.shape_cast %22 : vector<6x128xf32> to vector<1x6x128xf32>
    tpu.vector_store %arg2[%c2_19, %c0_20, %c0_21], %62 {strides = array<i32>} : memref<9x6x128xf32, #tpu.memory_space<vmem>>, vector<1x6x128xf32>,
    %c3_22 = arith.constant 3 : index
    %c0_23 = arith.constant 0 : index
    %c0_24 = arith.constant 0 : index
    %63 = vector.load %arg2[%c3_22, %c0_23, %c0_24] : memref<9x6x128xf32, #tpu.memory_space<vmem>>, vector<1x6x128xf32>
    %64 = vector.shape_cast %63 : vector<1x6x128xf32> to vector<6x128xf32>
    %65 = vector.shape_cast %42 : vector<6x128xf32> to vector<1x6x128xf32>
    tpu.vector_store %arg2[%c3_22, %c0_23, %c0_24], %65 {strides = array<i32>} : memref<9x6x128xf32, #tpu.memory_space<vmem>>, vector<1x6x128xf32>,
    %c4_25 = arith.constant 4 : index
    %c0_26 = arith.constant 0 : index
    %c0_27 = arith.constant 0 : index
    %66 = vector.load %arg2[%c4_25, %c0_26, %c0_27] : memref<9x6x128xf32, #tpu.memory_space<vmem>>, vector<1x6x128xf32>
    %67 = vector.shape_cast %66 : vector<1x6x128xf32> to vector<6x128xf32>
    %68 = vector.shape_cast %43 : vector<6x128xf32> to vector<1x6x128xf32>
    tpu.vector_store %arg2[%c4_25, %c0_26, %c0_27], %68 {strides = array<i32>} : memref<9x6x128xf32, #tpu.memory_space<vmem>>, vector<1x6x128xf32>,
    %c5_28 = arith.constant 5 : index
    %c0_29 = arith.constant 0 : index
    %c0_30 = arith.constant 0 : index
    %69 = vector.load %arg2[%c5_28, %c0_29, %c0_30] : memref<9x6x128xf32, #tpu.memory_space<vmem>>, vector<1x6x128xf32>
    %70 = vector.shape_cast %69 : vector<1x6x128xf32> to vector<6x128xf32>
    %71 = vector.shape_cast %44 : vector<6x128xf32> to vector<1x6x128xf32>
    tpu.vector_store %arg2[%c5_28, %c0_29, %c0_30], %71 {strides = array<i32>} : memref<9x6x128xf32, #tpu.memory_space<vmem>>, vector<1x6x128xf32>,
    %c6 = arith.constant 6 : index
    %c0_31 = arith.constant 0 : index
    %c0_32 = arith.constant 0 : index
    %72 = vector.load %arg2[%c6, %c0_31, %c0_32] : memref<9x6x128xf32, #tpu.memory_space<vmem>>, vector<1x6x128xf32>
    %73 = vector.shape_cast %72 : vector<1x6x128xf32> to vector<6x128xf32>
    %74 = vector.shape_cast %47 : vector<6x128xf32> to vector<1x6x128xf32>
    tpu.vector_store %arg2[%c6, %c0_31, %c0_32], %74 {strides = array<i32>} : memref<9x6x128xf32, #tpu.memory_space<vmem>>, vector<1x6x128xf32>,
    %c7 = arith.constant 7 : index
    %c0_33 = arith.constant 0 : index
    %c0_34 = arith.constant 0 : index
    %75 = vector.load %arg2[%c7, %c0_33, %c0_34] : memref<9x6x128xf32, #tpu.memory_space<vmem>>, vector<1x6x128xf32>
    %76 = vector.shape_cast %75 : vector<1x6x128xf32> to vector<6x128xf32>
    %77 = vector.shape_cast %50 : vector<6x128xf32> to vector<1x6x128xf32>
    tpu.vector_store %arg2[%c7, %c0_33, %c0_34], %77 {strides = array<i32>} : memref<9x6x128xf32, #tpu.memory_space<vmem>>, vector<1x6x128xf32>,
    %c8 = arith.constant 8 : index
    %c0_35 = arith.constant 0 : index
    %c0_36 = arith.constant 0 : index
    %78 = vector.load %arg2[%c8, %c0_35, %c0_36] : memref<9x6x128xf32, #tpu.memory_space<vmem>>, vector<1x6x128xf32>
    %79 = vector.shape_cast %78 : vector<1x6x128xf32> to vector<6x128xf32>
    %80 = vector.shape_cast %53 : vector<6x128xf32> to vector<1x6x128xf32>
    tpu.vector_store %arg2[%c8, %c0_35, %c0_36], %80 {strides = array<i32>} : memref<9x6x128xf32, #tpu.memory_space<vmem>>, vector<1x6x128xf32>,
    return
  }
  func.func @transform_0(%arg0: i32) -> (i32, i32, i32) {
    %c0_i32 = arith.constant 0 : i32
    %c0_i32_0 = arith.constant 0 : i32
    %c0_i32_1 = arith.constant 0 : i32
    return %c0_i32, %arg0, %c0_i32_0 : i32, i32, i32
  }
  func.func @transform_1(%arg0: i32) -> (i32, i32, i32) {
    %c0_i32 = arith.constant 0 : i32
    %c0_i32_0 = arith.constant 0 : i32
    %c0_i32_1 = arith.constant 0 : i32
    return %c0_i32, %arg0, %c0_i32_0 : i32, i32, i32
  }
}

</mosaic_0001>

<llo_original>
// kernel: _lambda_.3
$region0: #{_lambda_.3}
  #allocation0 [shape = 'u32[]', space=smem, size = 0x4, offset = 0x4, fixed_abs, tag = 'smem constant byte address 0x4 - core index']
  #allocation1 [shape = 'u32[144,128]{1,0:T(1,128)}', space=vmem, size = 0x12000, scoped, tag = 'internal scratch']
  %s0 = inlined_call_operand.vmem [shape: f32[6,6,128], index: 0, kind: input, shape index: {}]
  %s1 = inlined_call_operand.vmem [shape: f32[9,6,128], index: 1, kind: output, shape index: {}]
  %s2 = sld [smem:[#allocation0]]
  $region14: #{_lambda_.3} parent=0
    _
  %s4 = ssub.s32 1, %s2
  %s5 = scalar_select 0, %s4, %s2
  // Predicated region
  $region2: #{_lambda_.3} parent=0 // pred_check
    _
  $region3: #{_lambda_.3} parent=0 // pred_check_branch
    %7 = sbr.rel (0) target = $region5
  $region4: #{_lambda_.3} parent=0 // pred_region
    _
  $region5: #{_lambda_.3} parent=0 // pred_fallthru
    _
  %v8 = vld [vmem:[%s0] sm:$0x3f]
  %s9 = scalar_lea.vmem %s0, 8
  %v10 = vld [vmem:[%s9] sm:$0x3f]
  %s11 = scalar_lea.vmem %s0, 16
  %v12 = vld [vmem:[%s11] sm:$0x3f]
  %s13 = scalar_lea.vmem %s0, 24
  %v14 = vld [vmem:[%s13] sm:$0x3f]
  %s15 = scalar_lea.vmem %s0, 32
  %v16 = vld [vmem:[%s15] sm:$0x3f]
  %s17 = scalar_lea.vmem %s0, 40
  %v18 = vld [vmem:[%s17] sm:$0x3f]
  %v19 = vmul.f32 %v8, %v8
  %v20 = vmul.f32 %v10, %v10
  %v21 = vadd.f32 %v19, %v20
  %v22 = vmul.f32 %v12, %v12
  %v23 = vadd.f32 %v21, %v22
  %v24 = vmax.f32 %v23, 1e-24
  %v25 = vrsqrt.pop %v24
  %v26 = vmul.f32 %v8, %v25
  %v27 = vmul.f32 %v10, %v25
  %v28 = vmul.f32 %v12, %v25
  %v29 = vmul.f32 %v26, %v14
  %v30 = vmul.f32 %v27, %v16
  %v31 = vadd.f32 %v29, %v30
  %v32 = vmul.f32 %v28, %v18
  %v33 = vadd.f32 %v31, %v32
  %v34 = vmul.f32 %v33, %v26
  %v35 = vsub.f32 %v14, %v34
  %v36 = vmul.f32 %v33, %v27
  %v37 = vsub.f32 %v16, %v36
  %v38 = vmul.f32 %v33, %v28
  %v39 = vsub.f32 %v18, %v38
  %v40 = vmul.f32 %v35, %v35
  %v41 = vmul.f32 %v37, %v37
  %v42 = vadd.f32 %v40, %v41
  %v43 = vmul.f32 %v39, %v39
  %v44 = vadd.f32 %v42, %v43
  %v45 = vmax.f32 %v44, 1e-24
  %v46 = vrsqrt.pop %v45
  %v47 = vmul.f32 %v35, %v46
  %v48 = vmul.f32 %v37, %v46
  %v49 = vmul.f32 %v39, %v46
  %v50 = vmul.f32 %v27, %v49
  %v51 = vmul.f32 %v28, %v48
  %v52 = vsub.f32 %v50, %v51
  %v53 = vmul.f32 %v28, %v47
  %v54 = vmul.f32 %v26, %v49
  %v55 = vsub.f32 %v53, %v54
  %v56 = vmul.f32 %v26, %v48
  %v57 = vmul.f32 %v27, %v47
  %v58 = vsub.f32 %v56, %v57
  %59 = vst [vmem:[%s1] sm:$0x3f] %v26
  %s60 = scalar_lea.vmem %s1, 8
  %61 = vst [vmem:[%s60] sm:$0x3f] %v27
  %s62 = scalar_lea.vmem %s1, 16
  %63 = vst [vmem:[%s62] sm:$0x3f] %v28
  %s64 = scalar_lea.vmem %s1, 24
  %65 = vst [vmem:[%s64] sm:$0x3f] %v47
  %s66 = scalar_lea.vmem %s1, 32
  %67 = vst [vmem:[%s66] sm:$0x3f] %v48
  %s68 = scalar_lea.vmem %s1, 40
  %69 = vst [vmem:[%s68] sm:$0x3f] %v49
  %s70 = scalar_lea.vmem %s1, 48
  %71 = vst [vmem:[%s70] sm:$0x3f] %v52
  %s72 = scalar_lea.vmem %s1, 56
  %73 = vst [vmem:[%s72] sm:$0x3f] %v55
  %s74 = scalar_lea.vmem %s1, 64
  %75 = vst [vmem:[%s74] sm:$0x3f] %v58
  // Predicated region
  $region6: #{_lambda_.3} parent=0 // pred_check
    _
  $region7: #{_lambda_.3} parent=0 // pred_check_branch
    %77 = sbr.rel (0) target = $region9
  $region8: #{_lambda_.3} parent=0 // pred_region
    _
  $region9: #{_lambda_.3} parent=0 // pred_fallthru
    _
  // Predicated region
  $region10: #{_lambda_.3} parent=0 // pred_check
    _
  $region11: #{_lambda_.3} parent=0 // pred_check_branch
    %79 = sbr.rel (0) target = $region13
  $region12: #{_lambda_.3} parent=0 // pred_region
    _
  $region13: #{_lambda_.3} parent=0 // pred_fallthru
    _

// kernel: _lambda_.2
$region0: #{_lambda_.2}
  #allocation0 [shape = 'u32[]', space=smem, size = 0x4, offset = 0x4, fixed_abs, tag = 'smem constant byte address 0x4 - core index']
  #allocation1 [shape = 'u32[144,128]{1,0:T(1,128)}', space=vmem, size = 0x12000, scoped, tag = 'internal scratch']
  %s0 = inlined_call_operand.vmem [shape: f32[32,256], index: 0, kind: input, shape index: {}]
  %s1 = inlined_call_operand.vmem [shape: f32[1,256], index: 1, kind: input, shape index: {}]
  %s2 = inlined_call_operand.vmem [shape: f32[1,256], index: 2, kind: input, shape index: {}]
  %s3 = inlined_call_operand.vmem [shape: f32[256,128], index: 3, kind: input, shape index: {}]
  %s4 = inlined_call_operand.vmem [shape: f32[1,128], index: 4, kind: input, shape index: {}]
  %s5 = inlined_call_operand.vmem [shape: f32[128,256], index: 5, kind: input, shape index: {}]
  %s6 = inlined_call_operand.vmem [shape: f32[1,256], index: 6, kind: input, shape index: {}]
  %s7 = inlined_call_operand.vmem [shape: f32[32,256], index: 7, kind: output, shape index: {0}]
  %s8 = inlined_call_operand.vmem [shape: f32[1,8,128], index: 8, kind: output, shape index: {1}]
  %s9 = inlined_call_operand.vmem [shape: f32[1,8,128], index: 9, kind: output, shape index: {2}]
  %10 = xla_tuple %s7, %s8, %s9
  %s11 = sld [smem:[#allocation0]]
  $region54: #{_lambda_.2} parent=0
    _
  %s13 = ssub.s32 1, %s11
  %s14 = scalar_select 0, %s13, %s11
  // Predicated region
  $region2: #{_lambda_.2} parent=0 // pred_check
    _
  $region3: #{_lambda_.2} parent=0 // pred_check_branch
    %16 = sbr.rel (0) target = $region5
  $region4: #{_lambda_.2} parent=0 // pred_region
    _
  $region5: #{_lambda_.2} parent=0 // pred_fallthru
    _
  // Predicated region
  $region6: #{_lambda_.2} parent=0 // pred_check
    _
  $region7: #{_lambda_.2} parent=0 // pred_check_branch
    %18 = sbr.rel (0) target = $region9
  $region8: #{_lambda_.2} parent=0 // pred_region
    _
  $region9: #{_lambda_.2} parent=0 // pred_fallthru
    _
  // Predicated region
  $region10: #{_lambda_.2} parent=0 // pred_check
    _
  $region11: #{_lambda_.2} parent=0 // pred_check_branch
    %20 = sbr.rel (0) target = $region13
  $region12: #{_lambda_.2} parent=0 // pred_region
    _
  $region13: #{_lambda_.2} parent=0 // pred_fallthru
    _
  // Predicated region
  $region14: #{_lambda_.2} parent=0 // pred_check
    _
  $region15: #{_lambda_.2} parent=0 // pred_check_branch
    %22 = sbr.rel (0) target = $region17
  $region16: #{_lambda_.2} parent=0 // pred_region
    _
  $region17: #{_lambda_.2} parent=0 // pred_fallthru
    _
  // Predicated region
  $region18: #{_lambda_.2} parent=0 // pred_check
    _
  $region19: #{_lambda_.2} parent=0 // pred_check_branch
    %24 = sbr.rel (0) target = $region21
  $region20: #{_lambda_.2} parent=0 // pred_region
    _
  $region21: #{_lambda_.2} parent=0 // pred_fallthru
    _
  // Predicated region
  $region22: #{_lambda_.2} parent=0 // pred_check
    _
  $region23: #{_lambda_.2} parent=0 // pred_check_branch
    %26 = sbr.rel (0) target = $region25
  $region24: #{_lambda_.2} parent=0 // pred_region
    _
  $region25: #{_lambda_.2} parent=0 // pred_fallthru
    _
  // Predicated region
  $region26: #{_lambda_.2} parent=0 // pred_check
    _
  $region27: #{_lambda_.2} parent=0 // pred_check_branch
    %28 = sbr.rel (0) target = $region29
  $region28: #{_lambda_.2} parent=0 // pred_region
    _
  $region29: #{_lambda_.2} parent=0 // pred_fallthru
    _
  %v29 = vld [vmem:[%s0] sm:$0xff]
  %v30 = vld [vmem:[%s0 + $0x8] sm:$0xff]
  %v31 = vld [vmem:[%s0 + $0x10] sm:$0xff]
  %v32 = vld [vmem:[%s0 + $0x18] sm:$0xff]
  %v33 = vld [vmem:[%s0 + $0x20] sm:$0xff]
  %v34 = vld [vmem:[%s0 + $0x28] sm:$0xff]
  %v35 = vld [vmem:[%s0 + $0x30] sm:$0xff]
  %v36 = vld [vmem:[%s0 + $0x38] sm:$0xff]
  %v37 = vld [vmem:[%s3] sm:$0xff]
  %v38 = vld [vmem:[%s3 + $0x8] sm:$0xff]
  %v39 = vld [vmem:[%s3 + $0x10] sm:$0xff]
  %v40 = vld [vmem:[%s3 + $0x18] sm:$0xff]
  %v41 = vld [vmem:[%s3 + $0x20] sm:$0xff]
  %v42 = vld [vmem:[%s3 + $0x28] sm:$0xff]
  %v43 = vld [vmem:[%s3 + $0x30] sm:$0xff]
  %v44 = vld [vmem:[%s3 + $0x38] sm:$0xff]
  %v45 = vld [vmem:[%s3 + $0x40] sm:$0xff]
  %v46 = vld [vmem:[%s3 + $0x48] sm:$0xff]
  %v47 = vld [vmem:[%s3 + $0x50] sm:$0xff]
  %v48 = vld [vmem:[%s3 + $0x58] sm:$0xff]
  %v49 = vld [vmem:[%s3 + $0x60] sm:$0xff]
  %v50 = vld [vmem:[%s3 + $0x68] sm:$0xff]
  %v51 = vld [vmem:[%s3 + $0x70] sm:$0xff]
  %v52 = vld [vmem:[%s3 + $0x78] sm:$0xff]
  %v53 = vld [vmem:[%s3 + $0x80] sm:$0xff]
  %v54 = vld [vmem:[%s3 + $0x88] sm:$0xff]
  %v55 = vld [vmem:[%s3 + $0x90] sm:$0xff]
  %v56 = vld [vmem:[%s3 + $0x98] sm:$0xff]
  %v57 = vld [vmem:[%s3 + $0xa0] sm:$0xff]
  %v58 = vld [vmem:[%s3 + $0xa8] sm:$0xff]
  %v59 = vld [vmem:[%s3 + $0xb0] sm:$0xff]
  %v60 = vld [vmem:[%s3 + $0xb8] sm:$0xff]
  %v61 = vld [vmem:[%s3 + $0xc0] sm:$0xff]
  %v62 = vld [vmem:[%s3 + $0xc8] sm:$0xff]
  %v63 = vld [vmem:[%s3 + $0xd0] sm:$0xff]
  %v64 = vld [vmem:[%s3 + $0xd8] sm:$0xff]
  %v65 = vld [vmem:[%s3 + $0xe0] sm:$0xff]
  %v66 = vld [vmem:[%s3 + $0xe8] sm:$0xff]
  %v67 = vld [vmem:[%s3 + $0xf0] sm:$0xff]
  %v68 = vld [vmem:[%s3 + $0xf8] sm:$0xff]
  %v69 = vld [vmem:[%s4] sm:$0x1]
  %v71 = vlaneseq
  %v72 = vshrl.u32 %v71, 7
  %v73 = vsub.s32 0, %v72
  %v74 = vrot.slane %v69, %v73
  %76 = vmatprep.subr.mxu0 0.0
  %77 = vmatpush1.msra.mxu0 %v52
  %78 = vmatprep.subr.mxu0 0.0
  %79 = vmatpush1.msra.mxu0 %v51
  %80 = vmatprep.subr.mxu0 0.0
  %81 = vmatpush1.msra.mxu0 %v50
  %82 = vmatprep.subr.mxu0 0.0
  %83 = vmatpush1.msra.mxu0 %v49
  %84 = vmatprep.subr.mxu0 0.0
  %85 = vmatpush1.msra.mxu0 %v48
  %86 = vmatprep.subr.mxu0 0.0
  %87 = vmatpush1.msra.mxu0 %v47
  %88 = vmatprep.subr.mxu0 0.0
  %89 = vmatpush1.msra.mxu0 %v46
  %90 = vmatprep.subr.mxu0 0.0
  %91 = vmatpush1.msra.mxu0 %v45
  %92 = vmatprep.subr.mxu0 0.0
  %93 = vmatpush1.msra.mxu0 %v44
  %94 = vmatprep.subr.mxu0 0.0
  %95 = vmatpush1.msra.mxu0 %v43
  %96 = vmatprep.subr.mxu0 0.0
  %97 = vmatpush1.msra.mxu0 %v42
  %98 = vmatprep.subr.mxu0 0.0
  %99 = vmatpush1.msra.mxu0 %v41
  %100 = vmatprep.subr.mxu0 0.0
  %101 = vmatpush1.msra.mxu0 %v40
  %102 = vmatprep.subr.mxu0 0.0
  %103 = vmatpush1.msra.mxu0 %v39
  %104 = vmatprep.subr.mxu0 0.0
  %105 = vmatpush1.msra.mxu0 %v38
  %106 = vmatprep.subr.mxu0 0.0
  %107 = vmatpush1.msra.mxu0 %v37
  %108 = vmatprep.subr.mxu0 0.0
  %109 = vmatpush2.msra.mxu0 %v68
  %110 = vmatprep.subr.mxu0 0.0
  %111 = vmatpush2.msra.mxu0 %v67
  %112 = vmatprep.subr.mxu0 0.0
  %113 = vmatpush2.msra.mxu0 %v66
  %114 = vmatprep.subr.mxu0 0.0
  %115 = vmatpush2.msra.mxu0 %v65
  %116 = vmatprep.subr.mxu0 0.0
  %117 = vmatpush2.msra.mxu0 %v64
  %118 = vmatprep.subr.mxu0 0.0
  %119 = vmatpush2.msra.mxu0 %v63
  %120 = vmatprep.subr.mxu0 0.0
  %121 = vmatpush2.msra.mxu0 %v62
  %122 = vmatprep.subr.mxu0 0.0
  %123 = vmatpush2.msra.mxu0 %v61
  %124 = vmatprep.subr.mxu0 0.0
  %125 = vmatpush2.msra.mxu0 %v60
  %126 = vmatprep.subr.mxu0 0.0
  %127 = vmatpush2.msra.mxu0 %v59
  %128 = vmatprep.subr.mxu0 0.0
  %129 = vmatpush2.msra.mxu0 %v58
  %130 = vmatprep.subr.mxu0 0.0
  %131 = vmatpush2.msra.mxu0 %v57
  %132 = vmatprep.subr.mxu0 0.0
  %133 = vmatpush2.msra.mxu0 %v56
  %134 = vmatprep.subr.mxu0 0.0
  %135 = vmatpush2.msra.mxu0 %v55
  %136 = vmatprep.subr.mxu0 0.0
  %137 = vmatpush2.msra.mxu0 %v54
  %138 = vmatprep.subr.mxu0 0.0
  %139 = vmatpush2.msra.mxu0 %v53
  %140 = vmatprep.mubr.f32.mxu0 %v30
  %141 = vmatmul.mubr.f32.gmra.mxu0 %v29
  %v142 = vpop.f32.mrf.mxu0
  %v143 = vadd.f32 %v74, %v142
  %v144 = vpop.f32.mrf.mxu0
  %145 = vmatprep.mubr.f32.mxu0 %v32
  %146 = vmatmul.mubr.f32.gmra.mxu0 %v31
  %v147 = vpop.f32.mrf.mxu0
  %v148 = vadd.f32 %v74, %v147
  %v149 = vpop.f32.mrf.mxu0
  %150 = vmatprep.mubr.f32.mxu0 %v34
  %151 = vmatmul.mubr.f32.gmra.mxu0 %v33
  %v152 = vpop.f32.mrf.mxu0
  %v153 = vadd.f32 %v74, %v152
  %v154 = vpop.f32.mrf.mxu0
  %155 = vmatprep.mubr.f32.mxu0 %v36
  %156 = vmatmul.mubr.f32.gmra.mxu0 %v35
  %v157 = vpop.f32.mrf.mxu0
  %v158 = vadd.f32 %v74, %v157
  %v159 = vpop.f32.mrf.mxu0
  %160 = vdwg.mxu0
  %v161 = vmax.f32 %v143, 0.0
  %v162 = vmax.f32 %v148, 0.0
  %v163 = vmax.f32 %v153, 0.0
  %v164 = vmax.f32 %v158, 0.0
  %v165 = vld [vmem:[%s5] sm:$0xff]
  %v166 = vld [vmem:[%s5 + $0x8] sm:$0xff]
  %v167 = vld [vmem:[%s5 + $0x10] sm:$0xff]
  %v168 = vld [vmem:[%s5 + $0x18] sm:$0xff]
  %v169 = vld [vmem:[%s5 + $0x20] sm:$0xff]
  %v170 = vld [vmem:[%s5 + $0x28] sm:$0xff]
  %v171 = vld [vmem:[%s5 + $0x30] sm:$0xff]
  %v172 = vld [vmem:[%s5 + $0x38] sm:$0xff]
  %v173 = vld [vmem:[%s5 + $0x40] sm:$0xff]
  %v174 = vld [vmem:[%s5 + $0x48] sm:$0xff]
  %v175 = vld [vmem:[%s5 + $0x50] sm:$0xff]
  %v176 = vld [vmem:[%s5 + $0x58] sm:$0xff]
  %v177 = vld [vmem:[%s5 + $0x60] sm:$0xff]
  %v178 = vld [vmem:[%s5 + $0x68] sm:$0xff]
  %v179 = vld [vmem:[%s5 + $0x70] sm:$0xff]
  %v180 = vld [vmem:[%s5 + $0x78] sm:$0xff]
  %v181 = vld [vmem:[%s5 + $0x80] sm:$0xff]
  %v182 = vld [vmem:[%s5 + $0x88] sm:$0xff]
  %v183 = vld [vmem:[%s5 + $0x90] sm:$0xff]
  %v184 = vld [vmem:[%s5 + $0x98] sm:$0xff]
  %v185 = vld [vmem:[%s5 + $0xa0] sm:$0xff]
  %v186 = vld [vmem:[%s5 + $0xa8] sm:$0xff]
  %v187 = vld [vmem:[%s5 + $0xb0] sm:$0xff]
  %v188 = vld [vmem:[%s5 + $0xb8] sm:$0xff]
  %v189 = vld [vmem:[%s5 + $0xc0] sm:$0xff]
  %v190 = vld [vmem:[%s5 + $0xc8] sm:$0xff]
  %v191 = vld [vmem:[%s5 + $0xd0] sm:$0xff]
  %v192 = vld [vmem:[%s5 + $0xd8] sm:$0xff]
  %v193 = vld [vmem:[%s5 + $0xe0] sm:$0xff]
  %v194 = vld [vmem:[%s5 + $0xe8] sm:$0xff]
  %v195 = vld [vmem:[%s5 + $0xf0] sm:$0xff]
  %v196 = vld [vmem:[%s5 + $0xf8] sm:$0xff]
  %v197 = vld [vmem:[%s6] sm:$0x3]
  %v199 = vlaneseq
  %v200 = vshrl.u32 %v199, 7
  %v201 = vsub.s32 0, %v200
  %v202 = vrot.slane %v197, %v201
  %v203 = vlaneseq
  %v204 = vshrl.u32 %v203, 7
  %v205 = vsub.s32 1, %v204
  %v206 = vrot.slane %v197, %v205
  %209 = vmatprep.subr.mxu0 %v196
  %210 = vmatpush1.msra.mxu0 %v195
  %211 = vmatprep.subr.mxu0 %v194
  %212 = vmatpush1.msra.mxu0 %v193
  %213 = vmatprep.subr.mxu0 %v192
  %214 = vmatpush1.msra.mxu0 %v191
  %215 = vmatprep.subr.mxu0 %v190
  %216 = vmatpush1.msra.mxu0 %v189
  %217 = vmatprep.subr.mxu0 %v188
  %218 = vmatpush1.msra.mxu0 %v187
  %219 = vmatprep.subr.mxu0 %v186
  %220 = vmatpush1.msra.mxu0 %v185
  %221 = vmatprep.subr.mxu0 %v184
  %222 = vmatpush1.msra.mxu0 %v183
  %223 = vmatprep.subr.mxu0 %v182
  %224 = vmatpush1.msra.mxu0 %v181
  %225 = vmatprep.subr.mxu0 %v180
  %226 = vmatpush1.msra.mxu0 %v179
  %227 = vmatprep.subr.mxu0 %v178
  %228 = vmatpush1.msra.mxu0 %v177
  %229 = vmatprep.subr.mxu0 %v176
  %230 = vmatpush1.msra.mxu0 %v175
  %231 = vmatprep.subr.mxu0 %v174
  %232 = vmatpush1.msra.mxu0 %v173
  %233 = vmatprep.subr.mxu0 %v172
  %234 = vmatpush1.msra.mxu0 %v171
  %235 = vmatprep.subr.mxu0 %v170
  %236 = vmatpush1.msra.mxu0 %v169
  %237 = vmatprep.subr.mxu0 %v168
  %238 = vmatpush1.msra.mxu0 %v167
  %239 = vmatprep.subr.mxu0 %v166
  %240 = vmatpush1.msra.mxu0 %v165
  %241 = vmatprep.subr.mxu0 0.0
  %242 = vmatpush2.msra.mxu0 0.0
  %243 = vmatprep.subr.mxu0 0.0
  %244 = vmatpush2.msra.mxu0 0.0
  %245 = vmatprep.subr.mxu0 0.0
  %246 = vmatpush2.msra.mxu0 0.0
  %247 = vmatprep.subr.mxu0 0.0
  %248 = vmatpush2.msra.mxu0 0.0
  %249 = vmatprep.subr.mxu0 0.0
  %250 = vmatpush2.msra.mxu0 0.0
  %251 = vmatprep.subr.mxu0 0.0
  %252 = vmatpush2.msra.mxu0 0.0
  %253 = vmatprep.subr.mxu0 0.0
  %254 = vmatpush2.msra.mxu0 0.0
  %255 = vmatprep.subr.mxu0 0.0
  %256 = vmatpush2.msra.mxu0 0.0
  %257 = vmatprep.subr.mxu0 0.0
  %258 = vmatpush2.msra.mxu0 0.0
  %259 = vmatprep.subr.mxu0 0.0
  %260 = vmatpush2.msra.mxu0 0.0
  %261 = vmatprep.subr.mxu0 0.0
  %262 = vmatpush2.msra.mxu0 0.0
  %263 = vmatprep.subr.mxu0 0.0
  %264 = vmatpush2.msra.mxu0 0.0
  %265 = vmatprep.subr.mxu0 0.0
  %266 = vmatpush2.msra.mxu0 0.0
  %267 = vmatprep.subr.mxu0 0.0
  %268 = vmatpush2.msra.mxu0 0.0
  %269 = vmatprep.subr.mxu0 0.0
  %270 = vmatpush2.msra.mxu0 0.0
  %271 = vmatprep.subr.mxu0 0.0
  %272 = vmatpush2.msra.mxu0 0.0
  %273 = vmatprep.mubr.f32.mxu0 0.0
  %274 = vmatmul.mubr.f32.gmra.mxu0 %v161
  %v275 = vpop.f32.mrf.mxu0
  %v276 = vadd.f32 %v202, %v275
  %v277 = vpop.f32.mrf.mxu0
  %v278 = vadd.f32 %v206, %v277
  %279 = vmatprep.mubr.f32.mxu0 0.0
  %280 = vmatmul.mubr.f32.gmra.mxu0 %v162
  %v281 = vpop.f32.mrf.mxu0
  %v282 = vadd.f32 %v202, %v281
  %v283 = vpop.f32.mrf.mxu0
  %v284 = vadd.f32 %v206, %v283
  %285 = vmatprep.mubr.f32.mxu0 0.0
  %286 = vmatmul.mubr.f32.gmra.mxu0 %v163
  %v287 = vpop.f32.mrf.mxu0
  %v288 = vadd.f32 %v202, %v287
  %v289 = vpop.f32.mrf.mxu0
  %v290 = vadd.f32 %v206, %v289
  %291 = vmatprep.mubr.f32.mxu0 0.0
  %292 = vmatmul.mubr.f32.gmra.mxu0 %v164
  %v293 = vpop.f32.mrf.mxu0
  %v294 = vadd.f32 %v202, %v293
  %v295 = vpop.f32.mrf.mxu0
  %v296 = vadd.f32 %v206, %v295
  %297 = vdwg.mxu0
  %298 = vst [vmem:[%s7] sm:$0xff] %v276
  %299 = vst [vmem:[%s7 + $0x8] sm:$0xff] %v278
  %300 = vst [vmem:[%s7 + $0x10] sm:$0xff] %v282
  %301 = vst [vmem:[%s7 + $0x18] sm:$0xff] %v284
  %302 = vst [vmem:[%s7 + $0x20] sm:$0xff] %v288
  %303 = vst [vmem:[%s7 + $0x28] sm:$0xff] %v290
  %304 = vst [vmem:[%s7 + $0x30] sm:$0xff] %v294
  %305 = vst [vmem:[%s7 + $0x38] sm:$0xff] %v296
  %s306 = smul.u32 0, 32
  %v307 = vlaneseq
  %v308 = vshrl.u32 %v307, 7
  %v309 = vadd.s32 %v308, 8
  %v310 = vadd.s32 %v308, 16
  %v311 = vadd.s32 %v308, 24
  %v312 = vstv %s306
  %v313 = vadd.s32 %v312, %v308
  %v314 = vadd.s32 %v312, %v309
  %v315 = vadd.s32 %v312, %v310
  %v316 = vadd.s32 %v312, %v311
  %vm317 = vcmp.lt.s32.totalorder %v313, 32
  %vm318 = vcmp.lt.s32.totalorder %v314, 32
  %vm319 = vcmp.lt.s32.totalorder %v315, 32
  %vm320 = vcmp.lt.s32.totalorder %v316, 32
  %v321 = vsel %vm317, 1, 0
  %v322 = vsel %vm318, 1, 0
  %v323 = vsel %vm319, 1, 0
  %v324 = vsel %vm320, 1, 0
  %v325 = vcvt.s32.f32 %v321
  %v326 = vcvt.s32.f32 %v322
  %v327 = vcvt.s32.f32 %v323
  %v328 = vcvt.s32.f32 %v324
  %v329 = vsub.f32 %v276, %v29
  %v330 = vsub.f32 %v278, %v30
  %v331 = vsub.f32 %v282, %v31
  %v332 = vsub.f32 %v284, %v32
  %v333 = vsub.f32 %v288, %v33
  %v334 = vsub.f32 %v290, %v34
  %v335 = vsub.f32 %v294, %v35
  %v336 = vsub.f32 %v296, %v36
  %v337 = vand.u32 2147483647, %v329
  %v338 = vand.u32 2147483647, %v330
  %v339 = vand.u32 2147483647, %v331
  %v340 = vand.u32 2147483647, %v332
  %v341 = vand.u32 2147483647, %v333
  %v342 = vand.u32 2147483647, %v334
  %v343 = vand.u32 2147483647, %v335
  %v344 = vand.u32 2147483647, %v336
  %v345 = vmul.f32 %v337, %v325
  %v346 = vmul.f32 %v338, %v325
  %v347 = vmul.f32 %v339, %v326
  %v348 = vmul.f32 %v340, %v326
  %v349 = vmul.f32 %v341, %v327
  %v350 = vmul.f32 %v342, %v327
  %v351 = vmul.f32 %v343, %v328
  %v352 = vmul.f32 %v344, %v328
  %v353 = vld [vmem:[%s1] sm:$0x3]
  %v355 = vlaneseq
  %v356 = vshrl.u32 %v355, 7
  %v357 = vsub.s32 0, %v356
  %v358 = vrot.slane %v353, %v357
  %v359 = vlaneseq
  %v360 = vshrl.u32 %v359, 7
  %v361 = vsub.s32 1, %v360
  %v362 = vrot.slane %v353, %v361
  %v365 = vmul.f32 %v345, %v358
  %v366 = vmul.f32 %v346, %v362
  %v367 = vmul.f32 %v347, %v358
  %v368 = vmul.f32 %v348, %v362
  %v369 = vmul.f32 %v349, %v358
  %v370 = vmul.f32 %v350, %v362
  %v371 = vmul.f32 %v351, %v358
  %v372 = vmul.f32 %v352, %v362
  %v373 = vadd.f32 %v365, %v366
  %v374 = vadd.f32 %v373, %v367
  %v375 = vadd.f32 %v374, %v368
  %v376 = vadd.f32 %v375, %v369
  %v377 = vadd.f32 %v376, %v370
  %v378 = vadd.f32 %v377, %v371
  %v379 = vadd.f32 %v378, %v372
  %380 = vadd.xlane.f32.xlu0 %v379
  %v381 = vpop.xlane.xlu0 %380
  %v382 = vrot.slane %v381, 4
  %v383 = vadd.f32 %v381, %v382
  %v384 = vrot.slane %v383, 2
  %v385 = vadd.f32 %v383, %v384
  %v386 = vrot.slane %v385, 1
  %v387 = vadd.f32 %v385, %v386
  %s388 = vtos %v387
  %v389 = vld [vmem:[%s2] sm:$0x3]
  %v391 = vlaneseq
  %v392 = vshrl.u32 %v391, 7
  %v393 = vsub.s32 0, %v392
  %v394 = vrot.slane %v389, %v393
  %v395 = vlaneseq
  %v396 = vshrl.u32 %v395, 7
  %v397 = vsub.s32 1, %v396
  %v398 = vrot.slane %v389, %v397
  %v401 = vmul.f32 %v345, %v394
  %v402 = vmul.f32 %v346, %v398
  %v403 = vmul.f32 %v347, %v394
  %v404 = vmul.f32 %v348, %v398
  %v405 = vmul.f32 %v349, %v394
  %v406 = vmul.f32 %v350, %v398
  %v407 = vmul.f32 %v351, %v394
  %v408 = vmul.f32 %v352, %v398
  %v409 = vadd.f32 %v401, %v402
  %v410 = vadd.f32 %v409, %v403
  %v411 = vadd.f32 %v410, %v404
  %v412 = vadd.f32 %v411, %v405
  %v413 = vadd.f32 %v412, %v406
  %v414 = vadd.f32 %v413, %v407
  %v415 = vadd.f32 %v414, %v408
  %416 = vadd.xlane.f32.xlu0 %v415
  %v417 = vpop.xlane.xlu0 %416
  %v418 = vrot.slane %v417, 4
  %v419 = vadd.f32 %v417, %v418
  %v420 = vrot.slane %v419, 2
  %v421 = vadd.f32 %v419, %v420
  %v422 = vrot.slane %v421, 1
  %v423 = vadd.f32 %v421, %v422
  %s424 = vtos %v423
  %v425 = vstv %s388
  %426 = vst [vmem:[%s8] sm:$0xff] %v425
  %v427 = vstv %s424
  %428 = vst [vmem:[%s9] sm:$0xff] %v427
  // Predicated region
  $region30: #{_lambda_.2} parent=0 // pred_check
    _
  $region31: #{_lambda_.2} parent=0 // pred_check_branch
    %430 = sbr.rel (0) target = $region33
  $region32: #{_lambda_.2} parent=0 // pred_region
    _
  $region33: #{_lambda_.2} parent=0 // pred_fallthru
    _
  // Predicated region
  $region34: #{_lambda_.2} parent=0 // pred_check
    _
  $region35: #{_lambda_.2} parent=0 // pred_check_branch
    %432 = sbr.rel (0) target = $region37
  $region36: #{_lambda_.2} parent=0 // pred_region
    _
  $region37: #{_lambda_.2} parent=0 // pred_fallthru
    _
  // Predicated region
  $region38: #{_lambda_.2} parent=0 // pred_check
    _
  $region39: #{_lambda_.2} parent=0 // pred_check_branch
    %434 = sbr.rel (0) target = $region41
  $region40: #{_lambda_.2} parent=0 // pred_region
    _
  $region41: #{_lambda_.2} parent=0 // pred_fallthru
    _
  // Predicated region
  $region42: #{_lambda_.2} parent=0 // pred_check
    _
  $region43: #{_lambda_.2} parent=0 // pred_check_branch
    %436 = sbr.rel (0) target = $region45
  $region44: #{_lambda_.2} parent=0 // pred_region
    _
  $region45: #{_lambda_.2} parent=0 // pred_fallthru
    _
  // Predicated region
  $region46: #{_lambda_.2} parent=0 // pred_check
    _
  $region47: #{_lambda_.2} parent=0 // pred_check_branch
    %438 = sbr.rel (0) target = $region49
  $region48: #{_lambda_.2} parent=0 // pred_region
    _
  $region49: #{_lambda_.2} parent=0 // pred_fallthru
    _
  // Predicated region
  $region50: #{_lambda_.2} parent=0 // pred_check
    _
  $region51: #{_lambda_.2} parent=0 // pred_check_branch
    %440 = sbr.rel (0) target = $region53
  $region52: #{_lambda_.2} parent=0 // pred_region
    _
  $region53: #{_lambda_.2} parent=0 // pred_fallthru
    _

</llo_original>
